<compile_context>
chip_gen: v7x
topology: tpu7x:2x2x1
jax: 0.10.0
libtpu: 0.0.40
codegen_flags: <defaults>
</compile_context>

<pallas_src>
import functools

import jax
import jax.numpy as jnp
from jax.experimental import pallas as pl
from jax.experimental.pallas import tpu as pltpu


def basic_block_kernel(x_ref, t1_ref, b1_ref, t2_ref, b2_ref, o_ref, xp_ref):
    """`bt` batch elements per grid step.

    x_ref : (bt, H, W*C)        input slabs, lane-dense (W*C on the lane axis)
    t1_ref: (3, W*C, W*C)       conv1 block-Toeplitz weights (BN1 scale folded)
    b1_ref: (1, W*C)            BN1 bias, tiled over w
    t2_ref: (3, W*C, W*C)       conv2 block-Toeplitz weights (BN2 scale folded)
    b2_ref: (1, W*C)            BN2 bias, tiled over w
    o_ref : (bt, H, W*C)        output slabs
    xp_ref: (bt*(H+2), W*C)     VMEM scratch: per-image vertically padded maps
    """
    BT, H, WC = x_ref.shape
    S = H + 2                       # per-image padded row stride in scratch
    F = BT * S                      # total scratch rows

    # Halo-only zeroing: top/bottom rows of every image's padded block.
    # (Done every grid step so it stays correct under core-sharded grids.)
    zrow = jnp.zeros((1, WC), jnp.float32)
    for b in range(BT):
        xp_ref[b * S:b * S + 1, :] = zrow
        xp_ref[b * S + S - 1:b * S + S, :] = zrow

    bias1 = b1_ref[...]
    bias2 = b2_ref[...]
    xs = [x_ref[b] for b in range(BT)]               # keep for residual add

    # ---- conv1 (BN1 scale folded into weights) ----
    for b in range(BT):
        xp_ref[b * S + 1:b * S + 1 + H, :] = xs[b]
    acc = jnp.zeros((F - 2, WC), jnp.float32)
    for dy in range(3):
        acc += jnp.dot(xp_ref[dy:dy + F - 2, :], t1_ref[dy],
                       preferred_element_type=jnp.float32)
    # acc row q == padded output row q+1; rows between images are junk but
    # cheap to run through the elementwise ops and never read back.
    y = jnp.maximum(acc + bias1, 0.0)                 # bn1 bias + relu

    # ---- conv2 (BN2 scale folded); halo rows of xp are still zero ----
    for b in range(BT):
        xp_ref[b * S + 1:b * S + 1 + H, :] = y[b * S:b * S + H]
    acc = jnp.zeros((F - 2, WC), jnp.float32)
    for dy in range(3):
        acc += jnp.dot(xp_ref[dy:dy + F - 2, :], t2_ref[dy],
                       preferred_element_type=jnp.float32)

    # ---- bn2 bias + residual add + relu ----
    for b in range(BT):
        o_ref[b] = jnp.maximum(acc[b * S:b * S + H] + bias2 + xs[b], 0.0)


def _build_toeplitz(w_hwio, W):
    """(3, 3, C, C) HWIO weights -> (3, W*C, W*C) block-Toeplitz matrices.

    T[dy, (w+dx-1)*C + ci, w*C + co] = w_hwio[dy, dx, ci, co] for valid
    0 <= w+dx-1 < W (out-of-range taps dropped == horizontal zero padding).
    """
    mats = []
    for dy in range(3):
        t = sum(jnp.kron(jnp.eye(W, W, k=1 - dx, dtype=w_hwio.dtype),
                         w_hwio[dy, dx]) for dx in range(3))
        mats.append(t)
    return jnp.stack(mats)


@functools.partial(jax.jit, static_argnames=("bt",))
def basic_block(x_nchw, w1, s1, b1, w2, s2, b2, *, bt=None):
    """Fused BasicBlock forward.

    x_nchw : (N, C, H, W) float32  (PyTorch layout)
    w1, w2 : (3, 3, C, C) float32  (HWIO), stride=1, pad=1, no bias
    s1,b1,s2,b2 : (C,) folded batchnorm scale / bias (inference semantics)
    bt     : images per grid step (stacked along the matmul M axis)
    returns (N, C, H, W) float32
    """
    N, C, H, W = x_nchw.shape
    assert w1.shape == (3, 3, C, C) and w2.shape == (3, 3, C, C), (
        "kernel assumes inplanes == planes (stride=1, no downsample)")
    if bt is None:
        bt = 2 if N % 2 == 0 else 1
    assert N % bt == 0, "batch must be divisible by the batch tile"
    WC = W * C

    # Layout change NCHW -> (N, H, W*C); in production this should live
    # outside the hot path (accept NHWC directly).
    x = jnp.transpose(x_nchw, (0, 2, 3, 1)).reshape(N, H, WC)

    # Fold BN scale into conv output channels; build block-Toeplitz weights.
    t1 = _build_toeplitz(w1 * s1[None, None, None, :], W)   # (3, W*C, W*C)
    t2 = _build_toeplitz(w2 * s2[None, None, None, :], W)
    b1_flat = jnp.tile(b1, W).reshape(1, WC)
    b2_flat = jnp.tile(b2, W).reshape(1, WC)

    out = pl.pallas_call(
        basic_block_kernel,
        out_shape=jax.ShapeDtypeStruct((N, H, WC), jnp.float32),
        grid_spec=pltpu.PrefetchScalarGridSpec(
            num_scalar_prefetch=0,
            grid=(N // bt,),
            in_specs=[
                pl.BlockSpec((bt, H, WC), lambda n: (n, 0, 0)),
                pl.BlockSpec((3, WC, WC), lambda n: (0, 0, 0)),
                pl.BlockSpec((1, WC), lambda n: (0, 0)),
                pl.BlockSpec((3, WC, WC), lambda n: (0, 0, 0)),
                pl.BlockSpec((1, WC), lambda n: (0, 0)),
            ],
            out_specs=pl.BlockSpec((bt, H, WC), lambda n: (n, 0, 0)),
            scratch_shapes=[pltpu.VMEM((bt * (H + 2), WC), jnp.float32)],
        ),
        compiler_params=pltpu.CompilerParams(
            dimension_semantics=("parallel",),
            vmem_limit_bytes=32 * 1024 * 1024),
    )(x, t1, b1_flat, t2, b2_flat)

    return jnp.transpose(out.reshape(N, H, W, C), (0, 3, 1, 2))  # -> NCHW


def reference_basic_block(x_nchw, w1, s1, b1, w2, s2, b2):
    """Plain-JAX reference (NHWC convs via lax.conv_general_dilated)."""
    x = jnp.transpose(x_nchw, (0, 2, 3, 1))
    dn = ("NHWC", "HWIO", "NHWC")
    y = jax.lax.conv_general_dilated(x, w1, (1, 1), "SAME",
                                     dimension_numbers=dn)
    y = jnp.maximum(y * s1 + b1, 0.0)
    y = jax.lax.conv_general_dilated(y, w2, (1, 1), "SAME",
                                     dimension_numbers=dn)
    y = y * s2 + b2 + x
    y = jnp.maximum(y, 0.0)
    return jnp.transpose(y, (0, 3, 1, 2))


if __name__ == "__main__":
    # batch=4, inplanes=planes=8, spatial=16x16 -> lane-dense W*C = 128.
    # bt defaults to 2 -> grid=(2,): both megacore TCs busy AND the stacked-M
    # matmul path exercised.  stride=1, downsample=None (module defaults).
    N, C, H, W = 4, 8, 16, 16

    key = jax.random.PRNGKey(0)
    kx, kw1, kw2, kb = jax.random.split(key, 4)

    x = jax.random.normal(kx, (N, C, H, W), dtype=jnp.float32)

    # conv weights in HWIO, fan-in-scaled init (no bias).
    fan_in = 3 * 3 * C
    w1 = jax.random.normal(kw1, (3, 3, C, C), jnp.float32) / jnp.sqrt(fan_in)
    w2 = jax.random.normal(kw2, (3, 3, C, C), jnp.float32) / jnp.sqrt(fan_in)

    # BatchNorm2d params (inference semantics), folded into scale/bias.
    kb1, kb2, kb3, kb4 = jax.random.split(kb, 4)
    eps = 1e-5
    gamma1 = 1.0 + 0.1 * jax.random.normal(kb1, (C,), jnp.float32)
    beta1 = 0.1 * jax.random.normal(kb2, (C,), jnp.float32)
    mean1 = 0.1 * jax.random.normal(kb3, (C,), jnp.float32)
    var1 = jnp.abs(jax.random.normal(kb4, (C,), jnp.float32)) + 0.5
    s1 = gamma1 / jnp.sqrt(var1 + eps)
    b1 = beta1 - mean1 * s1

    kc1, kc2, kc3, kc4 = jax.random.split(kb1, 4)
    gamma2 = 1.0 + 0.1 * jax.random.normal(kc1, (C,), jnp.float32)
    beta2 = 0.1 * jax.random.normal(kc2, (C,), jnp.float32)
    mean2 = 0.1 * jax.random.normal(kc3, (C,), jnp.float32)
    var2 = jnp.abs(jax.random.normal(kc4, (C,), jnp.float32)) + 0.5
    s2 = gamma2 / jnp.sqrt(var2 + eps)
    b2 = beta2 - mean2 * s2

    out = basic_block(x, w1, s1, b1, w2, s2, b2)
    out = jax.block_until_ready(out)

    ref = reference_basic_block(x, w1, s1, b1, w2, s2, b2)
    assert out.shape == (N, C, H, W)
    assert jnp.allclose(out, ref, atol=1e-4, rtol=1e-4), (
        float(jnp.max(jnp.abs(out - ref))))

    print("KERNEL_OK")
</pallas_src>

<mosaic_0001>
module attributes {stable_mosaic.version = 11 : i64} {
  func.func @basic_block_kernel(%arg0: i32, %arg1: memref<2x16x128xf32, #tpu.memory_space<vmem>>, %arg2: memref<3x128x128xf32, #tpu.memory_space<vmem>>, %arg3: memref<1x128xf32, #tpu.memory_space<vmem>>, %arg4: memref<3x128x128xf32, #tpu.memory_space<vmem>>, %arg5: memref<1x128xf32, #tpu.memory_space<vmem>>, %arg6: memref<2x16x128xf32, #tpu.memory_space<vmem>>, %arg7: memref<36x128xf32, #tpu.memory_space<vmem>>) attributes {dimension_semantics = [#tpu.dimension_semantics<parallel>], iteration_bounds = array<i64: 2>, scalar_prefetch = 0 : i64, scratch_operands = 1 : i64, tpu.core_type = #tpu.core_type<tc>, window_params = [{transform_indices = @transform_0, window_bounds = array<i64: 2, 16, 128>}, {pipeline_mode = #tpu.pipeline_mode<synchronous>, transform_indices = @transform_1, window_bounds = array<i64: 3, 128, 128>}, {pipeline_mode = #tpu.pipeline_mode<synchronous>, transform_indices = @transform_2, window_bounds = array<i64: 1, 128>}, {pipeline_mode = #tpu.pipeline_mode<synchronous>, transform_indices = @transform_3, window_bounds = array<i64: 3, 128, 128>}, {pipeline_mode = #tpu.pipeline_mode<synchronous>, transform_indices = @transform_4, window_bounds = array<i64: 1, 128>}, {transform_indices = @transform_5, window_bounds = array<i64: 2, 16, 128>}]} {
    %cst = arith.constant 0.000000e+00 : f32
    %0 = vector.broadcast %cst : f32 to vector<1x128xf32>
    %c0 = arith.constant 0 : index
    %c0_0 = arith.constant 0 : index
    %1 = vector.load %arg7[%c0, %c0_0] : memref<36x128xf32, #tpu.memory_space<vmem>>, vector<1x128xf32>
    tpu.vector_store %arg7[%c0, %c0_0], %0 {strides = array<i32>} : memref<36x128xf32, #tpu.memory_space<vmem>>, vector<1x128xf32>,
    %c17 = arith.constant 17 : index
    %c0_1 = arith.constant 0 : index
    %2 = vector.load %arg7[%c17, %c0_1] : memref<36x128xf32, #tpu.memory_space<vmem>>, vector<1x128xf32>
    tpu.vector_store %arg7[%c17, %c0_1], %0 {strides = array<i32>} : memref<36x128xf32, #tpu.memory_space<vmem>>, vector<1x128xf32>,
    %c18 = arith.constant 18 : index
    %c0_2 = arith.constant 0 : index
    %3 = vector.load %arg7[%c18, %c0_2] : memref<36x128xf32, #tpu.memory_space<vmem>>, vector<1x128xf32>
    tpu.vector_store %arg7[%c18, %c0_2], %0 {strides = array<i32>} : memref<36x128xf32, #tpu.memory_space<vmem>>, vector<1x128xf32>,
    %c35 = arith.constant 35 : index
    %c0_3 = arith.constant 0 : index
    %4 = vector.load %arg7[%c35, %c0_3] : memref<36x128xf32, #tpu.memory_space<vmem>>, vector<1x128xf32>
    tpu.vector_store %arg7[%c35, %c0_3], %0 {strides = array<i32>} : memref<36x128xf32, #tpu.memory_space<vmem>>, vector<1x128xf32>,
    %c0_4 = arith.constant 0 : index
    %c0_5 = arith.constant 0 : index
    %5 = vector.load %arg3[%c0_4, %c0_5] : memref<1x128xf32, #tpu.memory_space<vmem>>, vector<1x128xf32>
    %c0_6 = arith.constant 0 : index
    %c0_7 = arith.constant 0 : index
    %6 = vector.load %arg5[%c0_6, %c0_7] : memref<1x128xf32, #tpu.memory_space<vmem>>, vector<1x128xf32>
    %c0_8 = arith.constant 0 : index
    %c0_9 = arith.constant 0 : index
    %c0_10 = arith.constant 0 : index
    %7 = vector.load %arg1[%c0_8, %c0_9, %c0_10] : memref<2x16x128xf32, #tpu.memory_space<vmem>>, vector<1x16x128xf32>
    %8 = vector.shape_cast %7 : vector<1x16x128xf32> to vector<16x128xf32>
    %c1 = arith.constant 1 : index
    %c0_11 = arith.constant 0 : index
    %c0_12 = arith.constant 0 : index
    %9 = vector.load %arg1[%c1, %c0_11, %c0_12] : memref<2x16x128xf32, #tpu.memory_space<vmem>>, vector<1x16x128xf32>
    %10 = vector.shape_cast %9 : vector<1x16x128xf32> to vector<16x128xf32>
    %c1_13 = arith.constant 1 : index
    %c0_14 = arith.constant 0 : index
    %11 = vector.load %arg7[%c1_13, %c0_14] : memref<36x128xf32, #tpu.memory_space<vmem>>, vector<16x128xf32>
    tpu.vector_store %arg7[%c1_13, %c0_14], %8 {strides = array<i32>} : memref<36x128xf32, #tpu.memory_space<vmem>>, vector<16x128xf32>,
    %c19 = arith.constant 19 : index
    %c0_15 = arith.constant 0 : index
    %12 = vector.load %arg7[%c19, %c0_15] : memref<36x128xf32, #tpu.memory_space<vmem>>, vector<16x128xf32>
    tpu.vector_store %arg7[%c19, %c0_15], %10 {strides = array<i32>} : memref<36x128xf32, #tpu.memory_space<vmem>>, vector<16x128xf32>,
    %cst_16 = arith.constant 0.000000e+00 : f32
    %13 = vector.broadcast %cst_16 : f32 to vector<34x128xf32>
    %c0_17 = arith.constant 0 : index
    %c0_18 = arith.constant 0 : index
    %14 = vector.load %arg7[%c0_17, %c0_18] : memref<36x128xf32, #tpu.memory_space<vmem>>, vector<34x128xf32>
    %c0_19 = arith.constant 0 : index
    %c0_20 = arith.constant 0 : index
    %c0_21 = arith.constant 0 : index
    %15 = vector.load %arg2[%c0_19, %c0_20, %c0_21] : memref<3x128x128xf32, #tpu.memory_space<vmem>>, vector<1x128x128xf32>
    %16 = vector.shape_cast %15 : vector<1x128x128xf32> to vector<128x128xf32>
    %cst_22 = arith.constant dense<0.000000e+00> : vector<34x128xf32>
    %17 = tpu.matmul %14, %16, %cst_22 {dimension_numbers = #tpu.dot_dimension_numbers<[1], [0], [0], [1], [0, 0, 1, 1], [], []>} : vector<34x128xf32>, vector<128x128xf32>, vector<34x128xf32> -> vector<34x128xf32>
    %18 = arith.addf %13, %17 : vector<34x128xf32>
    %c1_23 = arith.constant 1 : index
    %c0_24 = arith.constant 0 : index
    %19 = vector.load %arg7[%c1_23, %c0_24] : memref<36x128xf32, #tpu.memory_space<vmem>>, vector<34x128xf32>
    %c1_25 = arith.constant 1 : index
    %c0_26 = arith.constant 0 : index
    %c0_27 = arith.constant 0 : index
    %20 = vector.load %arg2[%c1_25, %c0_26, %c0_27] : memref<3x128x128xf32, #tpu.memory_space<vmem>>, vector<1x128x128xf32>
    %21 = vector.shape_cast %20 : vector<1x128x128xf32> to vector<128x128xf32>
    %cst_28 = arith.constant dense<0.000000e+00> : vector<34x128xf32>
    %22 = tpu.matmul %19, %21, %cst_28 {dimension_numbers = #tpu.dot_dimension_numbers<[1], [0], [0], [1], [0, 0, 1, 1], [], []>} : vector<34x128xf32>, vector<128x128xf32>, vector<34x128xf32> -> vector<34x128xf32>
    %23 = arith.addf %18, %22 : vector<34x128xf32>
    %c2 = arith.constant 2 : index
    %c0_29 = arith.constant 0 : index
    %24 = vector.load %arg7[%c2, %c0_29] : memref<36x128xf32, #tpu.memory_space<vmem>>, vector<34x128xf32>
    %c2_30 = arith.constant 2 : index
    %c0_31 = arith.constant 0 : index
    %c0_32 = arith.constant 0 : index
    %25 = vector.load %arg2[%c2_30, %c0_31, %c0_32] : memref<3x128x128xf32, #tpu.memory_space<vmem>>, vector<1x128x128xf32>
    %26 = vector.shape_cast %25 : vector<1x128x128xf32> to vector<128x128xf32>
    %cst_33 = arith.constant dense<0.000000e+00> : vector<34x128xf32>
    %27 = tpu.matmul %24, %26, %cst_33 {dimension_numbers = #tpu.dot_dimension_numbers<[1], [0], [0], [1], [0, 0, 1, 1], [], []>} : vector<34x128xf32>, vector<128x128xf32>, vector<34x128xf32> -> vector<34x128xf32>
    %28 = arith.addf %23, %27 : vector<34x128xf32>
    %29 = vector.broadcast %5 : vector<1x128xf32> to vector<34x128xf32>
    %30 = arith.addf %28, %29 : vector<34x128xf32>
    %cst_34 = arith.constant 0.000000e+00 : f32
    %31 = vector.broadcast %cst_34 : f32 to vector<34x128xf32>
    %32 = arith.maximumf %30, %31 : vector<34x128xf32>
    %33 = vector.extract_strided_slice %32 {offsets = [0, 0], sizes = [16, 128], strides = [1, 1]} : vector<34x128xf32> to vector<16x128xf32>
    %c1_35 = arith.constant 1 : index
    %c0_36 = arith.constant 0 : index
    %34 = vector.load %arg7[%c1_35, %c0_36] : memref<36x128xf32, #tpu.memory_space<vmem>>, vector<16x128xf32>
    tpu.vector_store %arg7[%c1_35, %c0_36], %33 {strides = array<i32>} : memref<36x128xf32, #tpu.memory_space<vmem>>, vector<16x128xf32>,
    %35 = vector.extract_strided_slice %32 {offsets = [18, 0], sizes = [16, 128], strides = [1, 1]} : vector<34x128xf32> to vector<16x128xf32>
    %c19_37 = arith.constant 19 : index
    %c0_38 = arith.constant 0 : index
    %36 = vector.load %arg7[%c19_37, %c0_38] : memref<36x128xf32, #tpu.memory_space<vmem>>, vector<16x128xf32>
    tpu.vector_store %arg7[%c19_37, %c0_38], %35 {strides = array<i32>} : memref<36x128xf32, #tpu.memory_space<vmem>>, vector<16x128xf32>,
    %cst_39 = arith.constant 0.000000e+00 : f32
    %37 = vector.broadcast %cst_39 : f32 to vector<34x128xf32>
    %c0_40 = arith.constant 0 : index
    %c0_41 = arith.constant 0 : index
    %38 = vector.load %arg7[%c0_40, %c0_41] : memref<36x128xf32, #tpu.memory_space<vmem>>, vector<34x128xf32>
    %c0_42 = arith.constant 0 : index
    %c0_43 = arith.constant 0 : index
    %c0_44 = arith.constant 0 : index
    %39 = vector.load %arg4[%c0_42, %c0_43, %c0_44] : memref<3x128x128xf32, #tpu.memory_space<vmem>>, vector<1x128x128xf32>
    %40 = vector.shape_cast %39 : vector<1x128x128xf32> to vector<128x128xf32>
    %cst_45 = arith.constant dense<0.000000e+00> : vector<34x128xf32>
    %41 = tpu.matmul %38, %40, %cst_45 {dimension_numbers = #tpu.dot_dimension_numbers<[1], [0], [0], [1], [0, 0, 1, 1], [], []>} : vector<34x128xf32>, vector<128x128xf32>, vector<34x128xf32> -> vector<34x128xf32>
    %42 = arith.addf %37, %41 : vector<34x128xf32>
    %c1_46 = arith.constant 1 : index
    %c0_47 = arith.constant 0 : index
    %43 = vector.load %arg7[%c1_46, %c0_47] : memref<36x128xf32, #tpu.memory_space<vmem>>, vector<34x128xf32>
    %c1_48 = arith.constant 1 : index
    %c0_49 = arith.constant 0 : index
    %c0_50 = arith.constant 0 : index
    %44 = vector.load %arg4[%c1_48, %c0_49, %c0_50] : memref<3x128x128xf32, #tpu.memory_space<vmem>>, vector<1x128x128xf32>
    %45 = vector.shape_cast %44 : vector<1x128x128xf32> to vector<128x128xf32>
    %cst_51 = arith.constant dense<0.000000e+00> : vector<34x128xf32>
    %46 = tpu.matmul %43, %45, %cst_51 {dimension_numbers = #tpu.dot_dimension_numbers<[1], [0], [0], [1], [0, 0, 1, 1], [], []>} : vector<34x128xf32>, vector<128x128xf32>, vector<34x128xf32> -> vector<34x128xf32>
    %47 = arith.addf %42, %46 : vector<34x128xf32>
    %c2_52 = arith.constant 2 : index
    %c0_53 = arith.constant 0 : index
    %48 = vector.load %arg7[%c2_52, %c0_53] : memref<36x128xf32, #tpu.memory_space<vmem>>, vector<34x128xf32>
    %c2_54 = arith.constant 2 : index
    %c0_55 = arith.constant 0 : index
    %c0_56 = arith.constant 0 : index
    %49 = vector.load %arg4[%c2_54, %c0_55, %c0_56] : memref<3x128x128xf32, #tpu.memory_space<vmem>>, vector<1x128x128xf32>
    %50 = vector.shape_cast %49 : vector<1x128x128xf32> to vector<128x128xf32>
    %cst_57 = arith.constant dense<0.000000e+00> : vector<34x128xf32>
    %51 = tpu.matmul %48, %50, %cst_57 {dimension_numbers = #tpu.dot_dimension_numbers<[1], [0], [0], [1], [0, 0, 1, 1], [], []>} : vector<34x128xf32>, vector<128x128xf32>, vector<34x128xf32> -> vector<34x128xf32>
    %52 = arith.addf %47, %51 : vector<34x128xf32>
    %53 = vector.extract_strided_slice %52 {offsets = [0, 0], sizes = [16, 128], strides = [1, 1]} : vector<34x128xf32> to vector<16x128xf32>
    %54 = vector.broadcast %6 : vector<1x128xf32> to vector<16x128xf32>
    %55 = arith.addf %53, %54 : vector<16x128xf32>
    %56 = arith.addf %55, %8 : vector<16x128xf32>
    %cst_58 = arith.constant 0.000000e+00 : f32
    %57 = vector.broadcast %cst_58 : f32 to vector<16x128xf32>
    %58 = arith.maximumf %56, %57 : vector<16x128xf32>
    %c0_59 = arith.constant 0 : index
    %c0_60 = arith.constant 0 : index
    %c0_61 = arith.constant 0 : index
    %59 = vector.load %arg6[%c0_59, %c0_60, %c0_61] : memref<2x16x128xf32, #tpu.memory_space<vmem>>, vector<1x16x128xf32>
    %60 = vector.shape_cast %59 : vector<1x16x128xf32> to vector<16x128xf32>
    %61 = vector.shape_cast %58 : vector<16x128xf32> to vector<1x16x128xf32>
    tpu.vector_store %arg6[%c0_59, %c0_60, %c0_61], %61 {strides = array<i32>} : memref<2x16x128xf32, #tpu.memory_space<vmem>>, vector<1x16x128xf32>,
    %62 = vector.extract_strided_slice %52 {offsets = [18, 0], sizes = [16, 128], strides = [1, 1]} : vector<34x128xf32> to vector<16x128xf32>
    %63 = vector.broadcast %6 : vector<1x128xf32> to vector<16x128xf32>
    %64 = arith.addf %62, %63 : vector<16x128xf32>
    %65 = arith.addf %64, %10 : vector<16x128xf32>
    %cst_62 = arith.constant 0.000000e+00 : f32
    %66 = vector.broadcast %cst_62 : f32 to vector<16x128xf32>
    %67 = arith.maximumf %65, %66 : vector<16x128xf32>
    %c1_63 = arith.constant 1 : index
    %c0_64 = arith.constant 0 : index
    %c0_65 = arith.constant 0 : index
    %68 = vector.load %arg6[%c1_63, %c0_64, %c0_65] : memref<2x16x128xf32, #tpu.memory_space<vmem>>, vector<1x16x128xf32>
    %69 = vector.shape_cast %68 : vector<1x16x128xf32> to vector<16x128xf32>
    %70 = vector.shape_cast %67 : vector<16x128xf32> to vector<1x16x128xf32>
    tpu.vector_store %arg6[%c1_63, %c0_64, %c0_65], %70 {strides = array<i32>} : memref<2x16x128xf32, #tpu.memory_space<vmem>>, vector<1x16x128xf32>,
    return
  }
  func.func @transform_0(%arg0: i32) -> (i32, i32, i32) {
    %c0_i32 = arith.constant 0 : i32
    %c0_i32_0 = arith.constant 0 : i32
    %c0_i32_1 = arith.constant 0 : i32
    return %arg0, %c0_i32, %c0_i32_0 : i32, i32, i32
  }
  func.func @transform_1(%arg0: i32) -> (i32, i32, i32) {
    %c0_i32 = arith.constant 0 : i32
    %c0_i32_0 = arith.constant 0 : i32
    %c0_i32_1 = arith.constant 0 : i32
    %c0_i32_2 = arith.constant 0 : i32
    return %c0_i32, %c0_i32_0, %c0_i32_1 : i32, i32, i32
  }
  func.func @transform_2(%arg0: i32) -> (i32, i32) {
    %c0_i32 = arith.constant 0 : i32
    %c0_i32_0 = arith.constant 0 : i32
    %c0_i32_1 = arith.constant 0 : i32
    return %c0_i32, %c0_i32_0 : i32, i32
  }
  func.func @transform_3(%arg0: i32) -> (i32, i32, i32) {
    %c0_i32 = arith.constant 0 : i32
    %c0_i32_0 = arith.constant 0 : i32
    %c0_i32_1 = arith.constant 0 : i32
    %c0_i32_2 = arith.constant 0 : i32
    return %c0_i32, %c0_i32_0, %c0_i32_1 : i32, i32, i32
  }
  func.func @transform_4(%arg0: i32) -> (i32, i32) {
    %c0_i32 = arith.constant 0 : i32
    %c0_i32_0 = arith.constant 0 : i32
    %c0_i32_1 = arith.constant 0 : i32
    return %c0_i32, %c0_i32_0 : i32, i32
  }
  func.func @transform_5(%arg0: i32) -> (i32, i32, i32) {
    %c0_i32 = arith.constant 0 : i32
    %c0_i32_0 = arith.constant 0 : i32
    %c0_i32_1 = arith.constant 0 : i32
    return %arg0, %c0_i32, %c0_i32_0 : i32, i32, i32
  }
}

</mosaic_0001>

<llo_original>
// kernel: tile.13
$region0: #{tile.13}
  #allocation0 [shape = 's32[1]{0}', space=sflag, size = 0x4, scoped, tag = 'scoped memory for tile.13']
  %s0 = inlined_call_operand.vmem [shape: f32[8], index: 0, kind: input, shape index: {}]
  %s1 = inlined_call_operand.vmem [shape: f32[16,8], index: 1, kind: output, shape index: {}]
  // Predicated region
  $region2: #{tile.13} parent=0 // pred_check
    _
  $region3: #{tile.13} parent=0 // pred_check_branch
    %3 = sbr.rel (0) target = $region5
  $region4: #{tile.13} parent=0 // pred_region
    _
  $region5: #{tile.13} parent=0 // pred_fallthru
    _
  %v4 = vld [vmem:[%s0] ss:$0 sm:$0xff]
  %5 = vst [vmem:[%s1] sm:$0xff] %v4
  %s6 = scalar_lea.vmem %s1, 8
  %7 = vst [vmem:[%s6] sm:$0xff] %v4

// kernel: tile.14
$region0: #{tile.14}
  %s0 = inlined_call_operand.vmem [shape: f32[16,8], index: 0, kind: input, shape index: {}]
  %s1 = inlined_call_operand.vmem [shape: f32[1,128], index: 1, kind: output, shape index: {}]
  $region1: #{tile.14} parent=0
    #allocation0 [shape = 'u8[4096]{0}', space=vmem, size = 0x1000, scoped, tag = 'scoped mem for output reshape']
    %v2 = vld [vmem:[%s0] sm:$0x1]
    %vm3 = vcmask 64512
    %4 = vst.msk [vmem:[#allocation0] sm:$0x1] %vm3, %v2
    %s5 = scalar_lea.vmem %s0, 15
    %v6 = vld [vmem:[%s5] sm:$0x1]
    %7 = vrot.lane.b32.xlu0 %v6, 120
    %v8 = vpop.permute.xlu0 %7
    %vm9 = vcmask 1048512
    %10 = vst.msk [vmem:[#allocation0] sm:$0x1] %vm9, %v8
    %s11 = scalar_lea.vmem %s0, 14
    %v12 = vld [vmem:[%s11] sm:$0x1]
    %13 = vrot.lane.b32.xlu0 %v12, 112
    %v14 = vpop.permute.xlu0 %13
    %vm15 = vcmask 982912
    %16 = vst.msk [vmem:[#allocation0] sm:$0x1] %vm15, %v14
    %s17 = scalar_lea.vmem %s0, 13
    %v18 = vld [vmem:[%s17] sm:$0x1]
    %19 = vrot.lane.b32.xlu0 %v18, 104
    %v20 = vpop.permute.xlu0 %19
    %vm21 = vcmask 917312
    %22 = vst.msk [vmem:[#allocation0] sm:$0x1] %vm21, %v20
    %s23 = scalar_lea.vmem %s0, 12
    %v24 = vld [vmem:[%s23] sm:$0x1]
    %25 = vrot.lane.b32.xlu0 %v24, 96
    %v26 = vpop.permute.xlu0 %25
    %vm27 = vcmask 851712
    %28 = vst.msk [vmem:[#allocation0] sm:$0x1] %vm27, %v26
    %s29 = scalar_lea.vmem %s0, 11
    %v30 = vld [vmem:[%s29] sm:$0x1]
    %31 = vrot.lane.b32.xlu0 %v30, 88
    %v32 = vpop.permute.xlu0 %31
    %vm33 = vcmask 786112
    %34 = vst.msk [vmem:[#allocation0] sm:$0x1] %vm33, %v32
    %s35 = scalar_lea.vmem %s0, 10
    %v36 = vld [vmem:[%s35] sm:$0x1]
    %37 = vrot.lane.b32.xlu0 %v36, 80
    %v38 = vpop.permute.xlu0 %37
    %vm39 = vcmask 720512
    %40 = vst.msk [vmem:[#allocation0] sm:$0x1] %vm39, %v38
    %s41 = scalar_lea.vmem %s0, 9
    %v42 = vld [vmem:[%s41] sm:$0x1]
    %43 = vrot.lane.b32.xlu0 %v42, 72
    %v44 = vpop.permute.xlu0 %43
    %vm45 = vcmask 654912
    %46 = vst.msk [vmem:[#allocation0] sm:$0x1] %vm45, %v44
    %s47 = scalar_lea.vmem %s0, 8
    %v48 = vld [vmem:[%s47] sm:$0x1]
    %49 = vrot.lane.b32.xlu0 %v48, 64
    %v50 = vpop.permute.xlu0 %49
    %vm51 = vcmask 589312
    %52 = vst.msk [vmem:[#allocation0] sm:$0x1] %vm51, %v50
    %s53 = scalar_lea.vmem %s0, 7
    %v54 = vld [vmem:[%s53] sm:$0x1]
    %55 = vrot.lane.b32.xlu0 %v54, 56
    %v56 = vpop.permute.xlu0 %55
    %vm57 = vcmask 523712
    %58 = vst.msk [vmem:[#allocation0] sm:$0x1] %vm57, %v56
    %s59 = scalar_lea.vmem %s0, 6
    %v60 = vld [vmem:[%s59] sm:$0x1]
    %61 = vrot.lane.b32.xlu0 %v60, 48
    %v62 = vpop.permute.xlu0 %61
    %vm63 = vcmask 458112
    %64 = vst.msk [vmem:[#allocation0] sm:$0x1] %vm63, %v62
    %s65 = scalar_lea.vmem %s0, 5
    %v66 = vld [vmem:[%s65] sm:$0x1]
    %67 = vrot.lane.b32.xlu0 %v66, 40
    %v68 = vpop.permute.xlu0 %67
    %vm69 = vcmask 392512
    %70 = vst.msk [vmem:[#allocation0] sm:$0x1] %vm69, %v68
    %s71 = scalar_lea.vmem %s0, 4
    %v72 = vld [vmem:[%s71] sm:$0x1]
    %73 = vrot.lane.b32.xlu0 %v72, 32
    %v74 = vpop.permute.xlu0 %73
    %vm75 = vcmask 326912
    %76 = vst.msk [vmem:[#allocation0] sm:$0x1] %vm75, %v74
    %s77 = scalar_lea.vmem %s0, 3
    %v78 = vld [vmem:[%s77] sm:$0x1]
    %79 = vrot.lane.b32.xlu0 %v78, 24
    %v80 = vpop.permute.xlu0 %79
    %vm81 = vcmask 261312
    %82 = vst.msk [vmem:[#allocation0] sm:$0x1] %vm81, %v80
    %s83 = scalar_lea.vmem %s0, 2
    %v84 = vld [vmem:[%s83] sm:$0x1]
    %85 = vrot.lane.b32.xlu0 %v84, 16
    %v86 = vpop.permute.xlu0 %85
    %vm87 = vcmask 195712
    %88 = vst.msk [vmem:[#allocation0] sm:$0x1] %vm87, %v86
    %s89 = scalar_lea.vmem %s0, 1
    %v90 = vld [vmem:[%s89] sm:$0x1]
    %91 = vrot.lane.b32.xlu0 %v90, 8
    %v92 = vpop.permute.xlu0 %91
    %vm93 = vcmask 130112
    %94 = vst.msk [vmem:[#allocation0] sm:$0x1] %vm93, %v92
    %s96 = sshllo.u32 0, 1
    %v98 = vld [vmem:[#allocation0] sm:%s96]
    %s99 = sshllo.u32 0, 1
    %100 = vst [vmem:[%s1] sm:%s99] %v98

// kernel: basic_block.1
$region0: #{basic_block.1}
  #allocation0 [shape = 'u32[]', space=smem, size = 0x4, offset = 0x4, fixed_abs, tag = 'smem constant byte address 0x4 - core index']
  #allocation1 [shape = 'u32[144,128]{1,0:T(1,128)}', space=vmem, size = 0x12000, scoped, tag = 'internal scratch']
  #allocation2 [shape = 'f32[36,128]{1,0:T(8,128)}', space=vmem, size = 0x5000, scoped, tag = 'scratch operand']
  %s0 = inlined_call_operand.vmem [shape: f32[4,16,128], index: 0, kind: input, shape index: {}]
  %s1 = inlined_call_operand.vmem [shape: f32[3,128,128], index: 1, kind: input, shape index: {}]
  %s2 = inlined_call_operand.vmem [shape: f32[1,128], index: 2, kind: input, shape index: {}]
  %s3 = inlined_call_operand.vmem [shape: f32[3,128,128], index: 3, kind: input, shape index: {}]
  %s4 = inlined_call_operand.vmem [shape: f32[1,128], index: 4, kind: input, shape index: {}]
  %s5 = inlined_call_operand.vmem [shape: f32[4,16,128], index: 5, kind: output, shape index: {}]
  %s6 = sld [smem:[#allocation0]]
  $region53: #{basic_block.1} parent=0
    _
  %s8 = ssub.s32 1, %s6
  %s9 = scalar_select 0, %s8, %s6
  loop: start=0, step=1, limit=4
  $region2: #{basic_block.1} parent=0 // loop_pre_header
    _
  $region3: #{basic_block.1} parent=0 // loop_header
    %s11 = sphi 0, %s15
    %p12 = scmp.ge.s32.totalorder %s11, 4
    %s21 = sphi 0, %s23
    %s24 = sphi 0, %s21
    %s25 = sphi 0, %s24
    %s41 = sphi 0, %s25
    %s45 = sphi 0, %s45
    %s47 = sphi 0, %s45
    %s48 = sphi 0, %s47
    %s62 = sphi 0, %s48
    %s66 = sphi 0, %s66
    %s68 = sphi 0, %s66
    %s69 = sphi 0, %s68
    %s83 = sphi 0, %s69
    %s87 = sphi 0, %s87
    %s89 = sphi 0, %s87
    %s90 = sphi 0, %s89
    %s104 = sphi 0, %s90
    %s108 = sphi 0, %s108
    %s110 = sphi 0, %s108
    %s111 = sphi 0, %s110
    %s125 = sphi 0, %s111
    %s131 = sphi 0, %s133
    %s134 = sphi 0, %s131
    %s135 = sphi 0, %s134
    %s151 = sphi 0, %s135
  $region4: #{basic_block.1} parent=0 // loop_header_branch
    %14 = sbr.rel (%p12) target = $region8
  $region5: #{basic_block.1} parent=0 // loop_body
    %s16 = ssub.s32 %s11, 1
    %s17 = ssub.s32 %s11, 2
    %s18 = sadd.s32 %s11, 1
    %s19 = ssub.s32 %s11, %s18
    %p20 = scmp.eq.s32.totalorder %s19, 0
    %s22 = sadd.s32 %s21, 1
    %s23 = scalar_select %p20, %s21, %s22
    %p26 = pneg %p20
    %p27 = scmp.eq.s32.totalorder %s11, 1
    %p28 = por %p26, %p27
    %p29 = scmp.ne.s32.totalorder %s21, %s24
    %p30 = scmp.eq.s32.totalorder %s11, 0
    %p31 = por %p29, %p30
    %p32 = scmp.ne.s32.totalorder %s21, %s24
    %p33 = scmp.eq.s32.totalorder %s16, 1
    %p34 = por %p32, %p33
    %p35 = scmp.ne.s32.totalorder %s24, %s25
    %p36 = scmp.eq.s32.totalorder %s16, 0
    %p37 = por %p35, %p36
    %p38 = scmp.ne.s32.totalorder %s24, %s25
    %p39 = scmp.eq.s32.totalorder %s17, 1
    %p40 = por %p38, %p39
    %p42 = scmp.ne.s32.totalorder %s25, %s41
    %p43 = scmp.eq.s32.totalorder %s17, 0
    %p44 = por %p42, %p43
    %s46 = sadd.s32 %s45, 1
    %p49 = scmp.eq.s32.totalorder %s11, 1
    %p50 = scmp.ne.s32.totalorder %s45, %s47
    %p51 = scmp.eq.s32.totalorder %s11, 0
    %p52 = por %p50, %p51
    %p53 = scmp.ne.s32.totalorder %s45, %s47
    %p54 = scmp.eq.s32.totalorder %s16, 1
    %p55 = por %p53, %p54
    %p56 = scmp.ne.s32.totalorder %s47, %s48
    %p57 = scmp.eq.s32.totalorder %s16, 0
    %p58 = por %p56, %p57
    %p59 = scmp.ne.s32.totalorder %s47, %s48
    %p60 = scmp.eq.s32.totalorder %s17, 1
    %p61 = por %p59, %p60
    %p63 = scmp.ne.s32.totalorder %s48, %s62
    %p64 = scmp.eq.s32.totalorder %s17, 0
    %p65 = por %p63, %p64
    %s67 = sadd.s32 %s66, 1
    %p70 = scmp.eq.s32.totalorder %s11, 1
    %p71 = scmp.ne.s32.totalorder %s66, %s68
    %p72 = scmp.eq.s32.totalorder %s11, 0
    %p73 = por %p71, %p72
    %p74 = scmp.ne.s32.totalorder %s66, %s68
    %p75 = scmp.eq.s32.totalorder %s16, 1
    %p76 = por %p74, %p75
    %p77 = scmp.ne.s32.totalorder %s68, %s69
    %p78 = scmp.eq.s32.totalorder %s16, 0
    %p79 = por %p77, %p78
    %p80 = scmp.ne.s32.totalorder %s68, %s69
    %p81 = scmp.eq.s32.totalorder %s17, 1
    %p82 = por %p80, %p81
    %p84 = scmp.ne.s32.totalorder %s69, %s83
    %p85 = scmp.eq.s32.totalorder %s17, 0
    %p86 = por %p84, %p85
    %s88 = sadd.s32 %s87, 1
    %p91 = scmp.eq.s32.totalorder %s11, 1
    %p92 = scmp.ne.s32.totalorder %s87, %s89
    %p93 = scmp.eq.s32.totalorder %s11, 0
    %p94 = por %p92, %p93
    %p95 = scmp.ne.s32.totalorder %s87, %s89
    %p96 = scmp.eq.s32.totalorder %s16, 1
    %p97 = por %p95, %p96
    %p98 = scmp.ne.s32.totalorder %s89, %s90
    %p99 = scmp.eq.s32.totalorder %s16, 0
    %p100 = por %p98, %p99
    %p101 = scmp.ne.s32.totalorder %s89, %s90
    %p102 = scmp.eq.s32.totalorder %s17, 1
    %p103 = por %p101, %p102
    %p105 = scmp.ne.s32.totalorder %s90, %s104
    %p106 = scmp.eq.s32.totalorder %s17, 0
    %p107 = por %p105, %p106
    %s109 = sadd.s32 %s108, 1
    %p112 = scmp.eq.s32.totalorder %s11, 1
    %p113 = scmp.ne.s32.totalorder %s108, %s110
    %p114 = scmp.eq.s32.totalorder %s11, 0
    %p115 = por %p113, %p114
    %p116 = scmp.ne.s32.totalorder %s108, %s110
    %p117 = scmp.eq.s32.totalorder %s16, 1
    %p118 = por %p116, %p117
    %p119 = scmp.ne.s32.totalorder %s110, %s111
    %p120 = scmp.eq.s32.totalorder %s16, 0
    %p121 = por %p119, %p120
    %p122 = scmp.ne.s32.totalorder %s110, %s111
    %p123 = scmp.eq.s32.totalorder %s17, 1
    %p124 = por %p122, %p123
    %p126 = scmp.ne.s32.totalorder %s111, %s125
    %p127 = scmp.eq.s32.totalorder %s17, 0
    %p128 = por %p126, %p127
    %s129 = ssub.s32 %s11, %s18
    %p130 = scmp.eq.s32.totalorder %s129, 0
    %s132 = sadd.s32 %s131, 1
    %s133 = scalar_select %p130, %s131, %s132
    %p136 = pneg %p130
    %p137 = scmp.eq.s32.totalorder %s11, 1
    %p138 = por %p136, %p137
    %p139 = scmp.ne.s32.totalorder %s131, %s134
    %p140 = scmp.eq.s32.totalorder %s11, 0
    %p141 = por %p139, %p140
    %p142 = scmp.ne.s32.totalorder %s131, %s134
    %p143 = scmp.eq.s32.totalorder %s16, 1
    %p144 = por %p142, %p143
    %p145 = scmp.ne.s32.totalorder %s134, %s135
    %p146 = scmp.eq.s32.totalorder %s16, 0
    %p147 = por %p145, %p146
    %p148 = scmp.ne.s32.totalorder %s134, %s135
    %p149 = scmp.eq.s32.totalorder %s17, 1
    %p150 = por %p148, %p149
    %p152 = scmp.ne.s32.totalorder %s135, %s151
    %p153 = scmp.eq.s32.totalorder %s17, 0
    %p154 = por %p152, %p153
    %p155 = scmp.le.s32.totalorder 1, %s11
    %p156 = scmp.lt.s32.totalorder %s11, 3
    %p157 = pnand %p155, %p156
    %p158 = pneg %p157
    // Predicated region
    $region9: #{basic_block.1} parent=5 // pred_check
      _
    $region10: #{basic_block.1} parent=5 // pred_check_branch
      %160 = sbr.rel (%p157) target = $region12
    $region11: #{basic_block.1} parent=5 // pred_region
      %s161 = ssub.s32 %s11, 1
      // Predicated region
      $region13: #{basic_block.1} parent=11 // pred_check
        %p162 = pneg %p58
      $region14: #{basic_block.1} parent=11 // pred_check_branch
        %164 = sbr.rel (%p162) target = $region16
      $region15: #{basic_block.1} parent=11 // pred_region
        _
      $region16: #{basic_block.1} parent=11 // pred_fallthru
        _
      // Predicated region
      $region17: #{basic_block.1} parent=11 // pred_check
        %p165 = pneg %p79
      $region18: #{basic_block.1} parent=11 // pred_check_branch
        %167 = sbr.rel (%p165) target = $region20
      $region19: #{basic_block.1} parent=11 // pred_region
        _
      $region20: #{basic_block.1} parent=11 // pred_fallthru
        _
      // Predicated region
      $region21: #{basic_block.1} parent=11 // pred_check
        %p168 = pneg %p100
      $region22: #{basic_block.1} parent=11 // pred_check_branch
        %170 = sbr.rel (%p168) target = $region24
      $region23: #{basic_block.1} parent=11 // pred_region
        _
      $region24: #{basic_block.1} parent=11 // pred_fallthru
        _
      // Predicated region
      $region25: #{basic_block.1} parent=11 // pred_check
        %p171 = pneg %p121
      $region26: #{basic_block.1} parent=11 // pred_check_branch
        %173 = sbr.rel (%p171) target = $region28
      $region27: #{basic_block.1} parent=11 // pred_region
        _
      $region28: #{basic_block.1} parent=11 // pred_fallthru
        _
    $region12: #{basic_block.1} parent=5 // pred_fallthru
      _
    %p174 = scmp.lt.s32.totalorder %s11, 2
    // Predicated region
    $region29: #{basic_block.1} parent=5 // pred_check
      %p175 = pneg %p174
    $region30: #{basic_block.1} parent=5 // pred_check_branch
      %177 = sbr.rel (%p175) target = $region32
    $region31: #{basic_block.1} parent=5 // pred_region
      // Predicated region
      $region33: #{basic_block.1} parent=31 // pred_check
        %p178 = pneg %p31
      $region34: #{basic_block.1} parent=31 // pred_check_branch
        %180 = sbr.rel (%p178) target = $region36
      $region35: #{basic_block.1} parent=31 // pred_region
        %s181 = smul.u32 2, %s11
        %p182 = scmp.lt.s32.totalorder %s181, 3
        %s183 = scalar_select %p182, %s181, 3
        %s184 = smul.addr %s183, 2
        %s185 = smul.addr %s184, 8
        %s186 = scalar_lea.vmem %s0, %s185
        %s187 = smul.u32 2, %s11
      $region36: #{basic_block.1} parent=31 // pred_fallthru
        _
    $region32: #{basic_block.1} parent=5 // pred_fallthru
      _
    %p188 = scmp.le.s32.totalorder 1, %s11
    %p189 = scmp.lt.s32.totalorder %s11, 3
    %p190 = pnand %p188, %p189
    %p191 = pneg %p190
    // Predicated region
    $region37: #{basic_block.1} parent=5 // pred_check
      _
    $region38: #{basic_block.1} parent=5 // pred_check_branch
      %193 = sbr.rel (%p190) target = $region40
    $region39: #{basic_block.1} parent=5 // pred_region
      %s194 = ssub.s32 %s11, 1
      %s195 = smul.u32 2, %s16
      %p196 = scmp.lt.s32.totalorder %s195, 3
      %s197 = scalar_select %p196, %s195, 3
      %s198 = smul.addr %s197, 2
      %s199 = smul.addr %s198, 8
      %s200 = scalar_lea.vmem %s0, %s199
      %p201 = pneg %p37
      %p202 = pneg %p34
      %p203 = pneg %p58
      %p204 = pneg %p55
      %p205 = pneg %p79
      %p206 = pneg %p76
      %p207 = pneg %p100
      %p208 = pneg %p97
      %p209 = pneg %p121
      %p210 = pneg %p118
      %p211 = pneg %p147
      %p212 = pneg %p144
      %s213 = smul.u32 2, %s16
      %p214 = scmp.lt.s32.totalorder %s213, 3
      %s215 = scalar_select %p214, %s213, 3
      %s216 = smul.addr %s215, 2
      %s217 = smul.addr %s216, 8
      %s218 = scalar_lea.vmem %s5, %s217
      %s219 = smul.u32 2, %s16
      %p220 = scmp.lt.s32.totalorder %s219, 3
      %s221 = scalar_select %p220, %s219, 3
      %s222 = smul.addr %s221, 2
      %s223 = smul.addr %s222, 8
      %s224 = scalar_lea.vmem %s0, %s223
      %s225 = smul.u32 2, %s16
      %s226 = smul.u32 2, %s16
      %p227 = scmp.lt.s32.totalorder %s226, 3
      %s228 = scalar_select %p227, %s226, 3
      %s229 = smul.addr %s228, 2
      %s230 = smul.addr %s229, 8
      %s231 = scalar_lea.vmem %s5, %s230
      %s232 = smul.u32 2, %s16
      %233 = vst [vmem:[#allocation2] sm:$0x1] 0.0
      %234 = vst [vmem:[#allocation2 + $0x11] sm:$0x1] 0.0
      %235 = vst [vmem:[#allocation2 + $0x12] sm:$0x1] 0.0
      %236 = vst [vmem:[#allocation2 + $0x23] sm:$0x1] 0.0
      %v237 = vld [vmem:[%s2] sm:$0x1]
      %v238 = vld [vmem:[%s4] sm:$0x1]
      %v239 = vld [vmem:[%s224] sm:$0xff]
      %v240 = vld [vmem:[%s224 + $0x8] sm:$0xff]
      %s241 = scalar_lea.vmem %s224, 16
      %v242 = vld [vmem:[%s241] sm:$0xff]
      %v243 = vld [vmem:[%s241 + $0x8] sm:$0xff]
      %244 = vst [vmem:[#allocation2 + $0x1] sm:$0xff] %v239
      %245 = vst [vmem:[#allocation2 + $0x9] sm:$0xff] %v240
      %246 = vst [vmem:[#allocation2 + $0x13] sm:$0xff] %v242
      %247 = vst [vmem:[#allocation2 + $0x1b] sm:$0xff] %v243
      %v248 = vld [vmem:[#allocation2] sm:$0xff]
      %v249 = vld [vmem:[#allocation2 + $0x8] sm:$0xff]
      %v250 = vld [vmem:[#allocation2 + $0x10] sm:$0xff]
      %v251 = vld [vmem:[#allocation2 + $0x18] sm:$0xff]
      %v252 = vld [vmem:[#allocation2 + $0x20] sm:$0x3]
      %v253 = vld [vmem:[%s1] sm:$0xff]
      %v254 = vld [vmem:[%s1 + $0x8] sm:$0xff]
      %v255 = vld [vmem:[%s1 + $0x10] sm:$0xff]
      %v256 = vld [vmem:[%s1 + $0x18] sm:$0xff]
      %v257 = vld [vmem:[%s1 + $0x20] sm:$0xff]
      %v258 = vld [vmem:[%s1 + $0x28] sm:$0xff]
      %v259 = vld [vmem:[%s1 + $0x30] sm:$0xff]
      %v260 = vld [vmem:[%s1 + $0x38] sm:$0xff]
      %v261 = vld [vmem:[%s1 + $0x40] sm:$0xff]
      %v262 = vld [vmem:[%s1 + $0x48] sm:$0xff]
      %v263 = vld [vmem:[%s1 + $0x50] sm:$0xff]
      %v264 = vld [vmem:[%s1 + $0x58] sm:$0xff]
      %v265 = vld [vmem:[%s1 + $0x60] sm:$0xff]
      %v266 = vld [vmem:[%s1 + $0x68] sm:$0xff]
      %v267 = vld [vmem:[%s1 + $0x70] sm:$0xff]
      %v268 = vld [vmem:[%s1 + $0x78] sm:$0xff]
      %v269 = vld [vmem:[#allocation2 + $0x1] sm:$0xff]
      %v270 = vld [vmem:[#allocation2 + $0x9] sm:$0xff]
      %v271 = vld [vmem:[#allocation2 + $0x11] sm:$0xff]
      %v272 = vld [vmem:[#allocation2 + $0x19] sm:$0xff]
      %v273 = vld [vmem:[#allocation2 + $0x21] sm:$0x3]
      %s274 = scalar_lea.vmem %s1, 128
      %v275 = vld [vmem:[%s274] sm:$0xff]
      %v276 = vld [vmem:[%s274 + $0x8] sm:$0xff]
      %v277 = vld [vmem:[%s274 + $0x10] sm:$0xff]
      %v278 = vld [vmem:[%s274 + $0x18] sm:$0xff]
      %v279 = vld [vmem:[%s274 + $0x20] sm:$0xff]
      %v280 = vld [vmem:[%s274 + $0x28] sm:$0xff]
      %v281 = vld [vmem:[%s274 + $0x30] sm:$0xff]
      %v282 = vld [vmem:[%s274 + $0x38] sm:$0xff]
      %v283 = vld [vmem:[%s274 + $0x40] sm:$0xff]
      %v284 = vld [vmem:[%s274 + $0x48] sm:$0xff]
      %v285 = vld [vmem:[%s274 + $0x50] sm:$0xff]
      %v286 = vld [vmem:[%s274 + $0x58] sm:$0xff]
      %v287 = vld [vmem:[%s274 + $0x60] sm:$0xff]
      %v288 = vld [vmem:[%s274 + $0x68] sm:$0xff]
      %v289 = vld [vmem:[%s274 + $0x70] sm:$0xff]
      %v290 = vld [vmem:[%s274 + $0x78] sm:$0xff]
      %291 = vmatprep.subr.mxu0 0.0
      %292 = vmatpush1.msra.mxu0 %v275
      %293 = vmatprep.subr.mxu0 0.0
      %294 = vmatpush1.msra.mxu0 %v276
      %295 = vmatprep.subr.mxu0 0.0
      %296 = vmatpush1.msra.mxu0 %v277
      %297 = vmatprep.subr.mxu0 0.0
      %298 = vmatpush1.msra.mxu0 %v278
      %299 = vmatprep.subr.mxu0 0.0
      %300 = vmatpush1.msra.mxu0 %v279
      %301 = vmatprep.subr.mxu0 0.0
      %302 = vmatpush1.msra.mxu0 %v280
      %303 = vmatprep.subr.mxu0 0.0
      %304 = vmatpush1.msra.mxu0 %v281
      %305 = vmatprep.subr.mxu0 0.0
      %306 = vmatpush1.msra.mxu0 %v282
      %307 = vmatprep.subr.mxu0 0.0
      %308 = vmatpush1.msra.mxu0 %v283
      %309 = vmatprep.subr.mxu0 0.0
      %310 = vmatpush1.msra.mxu0 %v284
      %311 = vmatprep.subr.mxu0 0.0
      %312 = vmatpush1.msra.mxu0 %v285
      %313 = vmatprep.subr.mxu0 0.0
      %314 = vmatpush1.msra.mxu0 %v286
      %315 = vmatprep.subr.mxu0 0.0
      %316 = vmatpush1.msra.mxu0 %v287
      %317 = vmatprep.subr.mxu0 0.0
      %318 = vmatpush1.msra.mxu0 %v288
      %319 = vmatprep.subr.mxu0 0.0
      %320 = vmatpush1.msra.mxu0 %v289
      %321 = vmatprep.subr.mxu0 0.0
      %322 = vmatpush1.msra.mxu0 %v290
      %323 = vmatprep.subr.mxu0 0.0
      %324 = vmatpush1.msra.mxu0 0.0
      %325 = vmatprep.subr.mxu0 0.0
      %326 = vmatpush1.msra.mxu0 0.0
      %327 = vmatprep.subr.mxu0 0.0
      %328 = vmatpush1.msra.mxu0 0.0
      %329 = vmatprep.subr.mxu0 0.0
      %330 = vmatpush1.msra.mxu0 0.0
      %331 = vmatprep.subr.mxu0 0.0
      %332 = vmatpush1.msra.mxu0 0.0
      %333 = vmatprep.subr.mxu0 0.0
      %334 = vmatpush1.msra.mxu0 0.0
      %335 = vmatprep.subr.mxu0 0.0
      %336 = vmatpush1.msra.mxu0 0.0
      %337 = vmatprep.subr.mxu0 0.0
      %338 = vmatpush1.msra.mxu0 0.0
      %339 = vmatprep.subr.mxu0 0.0
      %340 = vmatpush1.msra.mxu0 0.0
      %341 = vmatprep.subr.mxu0 0.0
      %342 = vmatpush1.msra.mxu0 0.0
      %343 = vmatprep.subr.mxu0 0.0
      %344 = vmatpush1.msra.mxu0 0.0
      %345 = vmatprep.subr.mxu0 0.0
      %346 = vmatpush1.msra.mxu0 0.0
      %347 = vmatprep.subr.mxu0 0.0
      %348 = vmatpush1.msra.mxu0 0.0
      %349 = vmatprep.subr.mxu0 0.0
      %350 = vmatpush1.msra.mxu0 0.0
      %351 = vmatprep.subr.mxu0 0.0
      %352 = vmatpush1.msra.mxu0 0.0
      %353 = vmatprep.subr.mxu0 0.0
      %354 = vmatpush1.msra.mxu0 0.0
      %355 = vmatprep.mubr.f32.mxu0 0.0
      %356 = vmatmul.mubr.f32.gmra.mrb[0].mxu0 %v269
      %v357 = vpop.f32.mrb[0].mxu0
      %v358 = vadd.f32 0.0, %v357
      %v359 = vpop.f32.mrb[0].mxu0
      %360 = vmatprep.mubr.f32.mxu0 0.0
      %361 = vmatmul.mubr.f32.gmra.mrb[0].mxu0 %v270
      %v362 = vpop.f32.mrb[0].mxu0
      %v363 = vadd.f32 0.0, %v362
      %v364 = vpop.f32.mrb[0].mxu0
      %365 = vmatprep.mubr.f32.mxu0 0.0
      %366 = vmatmul.mubr.f32.gmra.mrb[0].mxu0 %v271
      %v367 = vpop.f32.mrb[0].mxu0
      %v368 = vadd.f32 0.0, %v367
      %v369 = vpop.f32.mrb[0].mxu0
      %370 = vmatprep.mubr.f32.mxu0 0.0
      %371 = vmatmul.mubr.f32.gmra.mrb[0].mxu0 %v272
      %v372 = vpop.f32.mrb[0].mxu0
      %v373 = vadd.f32 0.0, %v372
      %v374 = vpop.f32.mrb[0].mxu0
      %375 = vmatprep.mubr.f32.mxu0 0.0
      %376 = vmatmul.mubr.f32.gmra.mrb[0].mxu0 %v273
      %v377 = vpop.f32.mrb[0].mxu0
      %v378 = vadd.f32 0.0, %v377
      %v379 = vpop.f32.mrb[0].mxu0
      %380 = vdwg.mxu0
      %381 = vmatprep.subr.mxu0 0.0
      %382 = vmatpush1.msra.mxu0 %v253
      %383 = vmatprep.subr.mxu0 0.0
      %384 = vmatpush1.msra.mxu0 %v254
      %385 = vmatprep.subr.mxu0 0.0
      %386 = vmatpush1.msra.mxu0 %v255
      %387 = vmatprep.subr.mxu0 0.0
      %388 = vmatpush1.msra.mxu0 %v256
      %389 = vmatprep.subr.mxu0 0.0
      %390 = vmatpush1.msra.mxu0 %v257
      %391 = vmatprep.subr.mxu0 0.0
      %392 = vmatpush1.msra.mxu0 %v258
      %393 = vmatprep.subr.mxu0 0.0
      %394 = vmatpush1.msra.mxu0 %v259
      %395 = vmatprep.subr.mxu0 0.0
      %396 = vmatpush1.msra.mxu0 %v260
      %397 = vmatprep.subr.mxu0 0.0
      %398 = vmatpush1.msra.mxu0 %v261
      %399 = vmatprep.subr.mxu0 0.0
      %400 = vmatpush1.msra.mxu0 %v262
      %401 = vmatprep.subr.mxu0 0.0
      %402 = vmatpush1.msra.mxu0 %v263
      %403 = vmatprep.subr.mxu0 0.0
      %404 = vmatpush1.msra.mxu0 %v264
      %405 = vmatprep.subr.mxu0 0.0
      %406 = vmatpush1.msra.mxu0 %v265
      %407 = vmatprep.subr.mxu0 0.0
      %408 = vmatpush1.msra.mxu0 %v266
      %409 = vmatprep.subr.mxu0 0.0
      %410 = vmatpush1.msra.mxu0 %v267
      %411 = vmatprep.subr.mxu0 0.0
      %412 = vmatpush1.msra.mxu0 %v268
      %413 = vmatprep.subr.mxu0 0.0
      %414 = vmatpush1.msra.mxu0 0.0
      %415 = vmatprep.subr.mxu0 0.0
      %416 = vmatpush1.msra.mxu0 0.0
      %417 = vmatprep.subr.mxu0 0.0
      %418 = vmatpush1.msra.mxu0 0.0
      %419 = vmatprep.subr.mxu0 0.0
      %420 = vmatpush1.msra.mxu0 0.0
      %421 = vmatprep.subr.mxu0 0.0
      %422 = vmatpush1.msra.mxu0 0.0
      %423 = vmatprep.subr.mxu0 0.0
      %424 = vmatpush1.msra.mxu0 0.0
      %425 = vmatprep.subr.mxu0 0.0
      %426 = vmatpush1.msra.mxu0 0.0
      %427 = vmatprep.subr.mxu0 0.0
      %428 = vmatpush1.msra.mxu0 0.0
      %429 = vmatprep.subr.mxu0 0.0
      %430 = vmatpush1.msra.mxu0 0.0
      %431 = vmatprep.subr.mxu0 0.0
      %432 = vmatpush1.msra.mxu0 0.0
      %433 = vmatprep.subr.mxu0 0.0
      %434 = vmatpush1.msra.mxu0 0.0
      %435 = vmatprep.subr.mxu0 0.0
      %436 = vmatpush1.msra.mxu0 0.0
      %437 = vmatprep.subr.mxu0 0.0
      %438 = vmatpush1.msra.mxu0 0.0
      %439 = vmatprep.subr.mxu0 0.0
      %440 = vmatpush1.msra.mxu0 0.0
      %441 = vmatprep.subr.mxu0 0.0
      %442 = vmatpush1.msra.mxu0 0.0
      %443 = vmatprep.subr.mxu0 0.0
      %444 = vmatpush1.msra.mxu0 0.0
      %445 = vmatprep.mubr.f32.mxu0 0.0
      %446 = vmatmul.mubr.f32.gmra.mrb[0].mxu0 %v248
      %v447 = vpop.f32.mrb[0].mxu0
      %v448 = vadd.f32 %v358, %v447
      %v449 = vpop.f32.mrb[0].mxu0
      %450 = vmatprep.mubr.f32.mxu0 0.0
      %451 = vmatmul.mubr.f32.gmra.mrb[0].mxu0 %v249
      %v452 = vpop.f32.mrb[0].mxu0
      %v453 = vadd.f32 %v363, %v452
      %v454 = vpop.f32.mrb[0].mxu0
      %455 = vmatprep.mubr.f32.mxu0 0.0
      %456 = vmatmul.mubr.f32.gmra.mrb[0].mxu0 %v250
      %v457 = vpop.f32.mrb[0].mxu0
      %v458 = vadd.f32 %v368, %v457
      %v459 = vpop.f32.mrb[0].mxu0
      %460 = vmatprep.mubr.f32.mxu0 0.0
      %461 = vmatmul.mubr.f32.gmra.mrb[0].mxu0 %v251
      %v462 = vpop.f32.mrb[0].mxu0
      %v463 = vadd.f32 %v373, %v462
      %v464 = vpop.f32.mrb[0].mxu0
      %465 = vmatprep.mubr.f32.mxu0 0.0
      %466 = vmatmul.mubr.f32.gmra.mrb[0].mxu0 %v252
      %v467 = vpop.f32.mrb[0].mxu0
      %v468 = vadd.f32 %v378, %v467
      %v469 = vpop.f32.mrb[0].mxu0
      %470 = vdwg.mxu0
      %v471 = vld [vmem:[#allocation2 + $0x2] sm:$0xff]
      %v472 = vld [vmem:[#allocation2 + $0xa] sm:$0xff]
      %v473 = vld [vmem:[#allocation2 + $0x12] sm:$0xff]
      %v474 = vld [vmem:[#allocation2 + $0x1a] sm:$0xff]
      %v475 = vld [vmem:[#allocation2 + $0x22] sm:$0x3]
      %s476 = scalar_lea.vmem %s1, 256
      %v477 = vld [vmem:[%s476] sm:$0xff]
      %v478 = vld [vmem:[%s476 + $0x8] sm:$0xff]
      %v479 = vld [vmem:[%s476 + $0x10] sm:$0xff]
      %v480 = vld [vmem:[%s476 + $0x18] sm:$0xff]
      %v481 = vld [vmem:[%s476 + $0x20] sm:$0xff]
      %v482 = vld [vmem:[%s476 + $0x28] sm:$0xff]
      %v483 = vld [vmem:[%s476 + $0x30] sm:$0xff]
      %v484 = vld [vmem:[%s476 + $0x38] sm:$0xff]
      %v485 = vld [vmem:[%s476 + $0x40] sm:$0xff]
      %v486 = vld [vmem:[%s476 + $0x48] sm:$0xff]
      %v487 = vld [vmem:[%s476 + $0x50] sm:$0xff]
      %v488 = vld [vmem:[%s476 + $0x58] sm:$0xff]
      %v489 = vld [vmem:[%s476 + $0x60] sm:$0xff]
      %v490 = vld [vmem:[%s476 + $0x68] sm:$0xff]
      %v491 = vld [vmem:[%s476 + $0x70] sm:$0xff]
      %v492 = vld [vmem:[%s476 + $0x78] sm:$0xff]
      %493 = vmatprep.subr.mxu0 0.0
      %494 = vmatpush1.msra.mxu0 %v477
      %495 = vmatprep.subr.mxu0 0.0
      %496 = vmatpush1.msra.mxu0 %v478
      %497 = vmatprep.subr.mxu0 0.0
      %498 = vmatpush1.msra.mxu0 %v479
      %499 = vmatprep.subr.mxu0 0.0
      %500 = vmatpush1.msra.mxu0 %v480
      %501 = vmatprep.subr.mxu0 0.0
      %502 = vmatpush1.msra.mxu0 %v481
      %503 = vmatprep.subr.mxu0 0.0
      %504 = vmatpush1.msra.mxu0 %v482
      %505 = vmatprep.subr.mxu0 0.0
      %506 = vmatpush1.msra.mxu0 %v483
      %507 = vmatprep.subr.mxu0 0.0
      %508 = vmatpush1.msra.mxu0 %v484
      %509 = vmatprep.subr.mxu0 0.0
      %510 = vmatpush1.msra.mxu0 %v485
      %511 = vmatprep.subr.mxu0 0.0
      %512 = vmatpush1.msra.mxu0 %v486
      %513 = vmatprep.subr.mxu0 0.0
      %514 = vmatpush1.msra.mxu0 %v487
      %515 = vmatprep.subr.mxu0 0.0
      %516 = vmatpush1.msra.mxu0 %v488
      %517 = vmatprep.subr.mxu0 0.0
      %518 = vmatpush1.msra.mxu0 %v489
      %519 = vmatprep.subr.mxu0 0.0
      %520 = vmatpush1.msra.mxu0 %v490
      %521 = vmatprep.subr.mxu0 0.0
      %522 = vmatpush1.msra.mxu0 %v491
      %523 = vmatprep.subr.mxu0 0.0
      %524 = vmatpush1.msra.mxu0 %v492
      %525 = vmatprep.subr.mxu0 0.0
      %526 = vmatpush1.msra.mxu0 0.0
      %527 = vmatprep.subr.mxu0 0.0
      %528 = vmatpush1.msra.mxu0 0.0
      %529 = vmatprep.subr.mxu0 0.0
      %530 = vmatpush1.msra.mxu0 0.0
      %531 = vmatprep.subr.mxu0 0.0
      %532 = vmatpush1.msra.mxu0 0.0
      %533 = vmatprep.subr.mxu0 0.0
      %534 = vmatpush1.msra.mxu0 0.0
      %535 = vmatprep.subr.mxu0 0.0
      %536 = vmatpush1.msra.mxu0 0.0
      %537 = vmatprep.subr.mxu0 0.0
      %538 = vmatpush1.msra.mxu0 0.0
      %539 = vmatprep.subr.mxu0 0.0
      %540 = vmatpush1.msra.mxu0 0.0
      %541 = vmatprep.subr.mxu0 0.0
      %542 = vmatpush1.msra.mxu0 0.0
      %543 = vmatprep.subr.mxu0 0.0
      %544 = vmatpush1.msra.mxu0 0.0
      %545 = vmatprep.subr.mxu0 0.0
      %546 = vmatpush1.msra.mxu0 0.0
      %547 = vmatprep.subr.mxu0 0.0
      %548 = vmatpush1.msra.mxu0 0.0
      %549 = vmatprep.subr.mxu0 0.0
      %550 = vmatpush1.msra.mxu0 0.0
      %551 = vmatprep.subr.mxu0 0.0
      %552 = vmatpush1.msra.mxu0 0.0
      %553 = vmatprep.subr.mxu0 0.0
      %554 = vmatpush1.msra.mxu0 0.0
      %555 = vmatprep.subr.mxu0 0.0
      %556 = vmatpush1.msra.mxu0 0.0
      %557 = vmatprep.mubr.f32.mxu0 0.0
      %558 = vmatmul.mubr.f32.gmra.mrb[0].mxu0 %v471
      %v559 = vpop.f32.mrb[0].mxu0
      %v560 = vadd.f32 0.0, %v559
      %v561 = vpop.f32.mrb[0].mxu0
      %562 = vmatprep.mubr.f32.mxu0 0.0
      %563 = vmatmul.mubr.f32.gmra.mrb[0].mxu0 %v472
      %v564 = vpop.f32.mrb[0].mxu0
      %v565 = vadd.f32 0.0, %v564
      %v566 = vpop.f32.mrb[0].mxu0
      %567 = vmatprep.mubr.f32.mxu0 0.0
      %568 = vmatmul.mubr.f32.gmra.mrb[0].mxu0 %v473
      %v569 = vpop.f32.mrb[0].mxu0
      %v570 = vadd.f32 0.0, %v569
      %v571 = vpop.f32.mrb[0].mxu0
      %572 = vmatprep.mubr.f32.mxu0 0.0
      %573 = vmatmul.mubr.f32.gmra.mrb[0].mxu0 %v474
      %v574 = vpop.f32.mrb[0].mxu0
      %v575 = vadd.f32 0.0, %v574
      %v576 = vpop.f32.mrb[0].mxu0
      %577 = vmatprep.mubr.f32.mxu0 0.0
      %578 = vmatmul.mubr.f32.gmra.mrb[0].mxu0 %v475
      %v579 = vpop.f32.mrb[0].mxu0
      %v580 = vadd.f32 0.0, %v579
      %v581 = vpop.f32.mrb[0].mxu0
      %582 = vdwg.mxu0
      %v583 = vadd.f32 %v448, %v560
      %v584 = vadd.f32 %v453, %v565
      %v585 = vadd.f32 %v458, %v570
      %v586 = vadd.f32 %v463, %v575
      %v587 = vadd.f32 %v468, %v580
      %v589 = vlaneseq
      %v590 = vshrl.u32 %v589, 7
      %v591 = vsub.s32 0, %v590
      %v592 = vrot.slane %v237, %v591
      %v594 = vadd.f32 %v583, %v592
      %v595 = vadd.f32 %v584, %v592
      %v596 = vadd.f32 %v585, %v592
      %v597 = vadd.f32 %v586, %v592
      %v598 = vadd.f32 %v587, %v592
      %v599 = vmax.f32 %v594, 0.0
      %v600 = vmax.f32 %v595, 0.0
      %v601 = vmax.f32 %v596, 0.0
      %v602 = vmax.f32 %v597, 0.0
      %v603 = vmax.f32 %v598, 0.0
      %604 = vst [vmem:[#allocation2 + $0x1] sm:$0xff] %v599
      %605 = vst [vmem:[#allocation2 + $0x9] sm:$0xff] %v600
      %606 = vst [vmem:[#allocation2 + $0x11] sm:$0xfc] %v601
      %607 = vst [vmem:[#allocation2 + $0x19] sm:$0xff] %v602
      %608 = vst [vmem:[#allocation2 + $0x21] sm:$0x3] %v603
      %v609 = vld [vmem:[#allocation2] sm:$0xff]
      %v610 = vld [vmem:[#allocation2 + $0x8] sm:$0xff]
      %v611 = vld [vmem:[#allocation2 + $0x10] sm:$0xff]
      %v612 = vld [vmem:[#allocation2 + $0x18] sm:$0xff]
      %v613 = vld [vmem:[#allocation2 + $0x20] sm:$0x3]
      %v614 = vld [vmem:[%s3] sm:$0xff]
      %v615 = vld [vmem:[%s3 + $0x8] sm:$0xff]
      %v616 = vld [vmem:[%s3 + $0x10] sm:$0xff]
      %v617 = vld [vmem:[%s3 + $0x18] sm:$0xff]
      %v618 = vld [vmem:[%s3 + $0x20] sm:$0xff]
      %v619 = vld [vmem:[%s3 + $0x28] sm:$0xff]
      %v620 = vld [vmem:[%s3 + $0x30] sm:$0xff]
      %v621 = vld [vmem:[%s3 + $0x38] sm:$0xff]
      %v622 = vld [vmem:[%s3 + $0x40] sm:$0xff]
      %v623 = vld [vmem:[%s3 + $0x48] sm:$0xff]
      %v624 = vld [vmem:[%s3 + $0x50] sm:$0xff]
      %v625 = vld [vmem:[%s3 + $0x58] sm:$0xff]
      %v626 = vld [vmem:[%s3 + $0x60] sm:$0xff]
      %v627 = vld [vmem:[%s3 + $0x68] sm:$0xff]
      %v628 = vld [vmem:[%s3 + $0x70] sm:$0xff]
      %v629 = vld [vmem:[%s3 + $0x78] sm:$0xff]
      %v630 = vld [vmem:[#allocation2 + $0x1] sm:$0xff]
      %v631 = vld [vmem:[#allocation2 + $0x9] sm:$0xff]
      %v632 = vld [vmem:[#allocation2 + $0x11] sm:$0xff]
      %v633 = vld [vmem:[#allocation2 + $0x19] sm:$0xff]
      %v634 = vld [vmem:[#allocation2 + $0x21] sm:$0x3]
      %s635 = scalar_lea.vmem %s3, 128
      %v636 = vld [vmem:[%s635] sm:$0xff]
      %v637 = vld [vmem:[%s635 + $0x8] sm:$0xff]
      %v638 = vld [vmem:[%s635 + $0x10] sm:$0xff]
      %v639 = vld [vmem:[%s635 + $0x18] sm:$0xff]
      %v640 = vld [vmem:[%s635 + $0x20] sm:$0xff]
      %v641 = vld [vmem:[%s635 + $0x28] sm:$0xff]
      %v642 = vld [vmem:[%s635 + $0x30] sm:$0xff]
      %v643 = vld [vmem:[%s635 + $0x38] sm:$0xff]
      %v644 = vld [vmem:[%s635 + $0x40] sm:$0xff]
      %v645 = vld [vmem:[%s635 + $0x48] sm:$0xff]
      %v646 = vld [vmem:[%s635 + $0x50] sm:$0xff]
      %v647 = vld [vmem:[%s635 + $0x58] sm:$0xff]
      %v648 = vld [vmem:[%s635 + $0x60] sm:$0xff]
      %v649 = vld [vmem:[%s635 + $0x68] sm:$0xff]
      %v650 = vld [vmem:[%s635 + $0x70] sm:$0xff]
      %v651 = vld [vmem:[%s635 + $0x78] sm:$0xff]
      %652 = vmatprep.subr.mxu0 0.0
      %653 = vmatpush1.msra.mxu0 %v636
      %654 = vmatprep.subr.mxu0 0.0
      %655 = vmatpush1.msra.mxu0 %v637
      %656 = vmatprep.subr.mxu0 0.0
      %657 = vmatpush1.msra.mxu0 %v638
      %658 = vmatprep.subr.mxu0 0.0
      %659 = vmatpush1.msra.mxu0 %v639
      %660 = vmatprep.subr.mxu0 0.0
      %661 = vmatpush1.msra.mxu0 %v640
      %662 = vmatprep.subr.mxu0 0.0
      %663 = vmatpush1.msra.mxu0 %v641
      %664 = vmatprep.subr.mxu0 0.0
      %665 = vmatpush1.msra.mxu0 %v642
      %666 = vmatprep.subr.mxu0 0.0
      %667 = vmatpush1.msra.mxu0 %v643
      %668 = vmatprep.subr.mxu0 0.0
      %669 = vmatpush1.msra.mxu0 %v644
      %670 = vmatprep.subr.mxu0 0.0
      %671 = vmatpush1.msra.mxu0 %v645
      %672 = vmatprep.subr.mxu0 0.0
      %673 = vmatpush1.msra.mxu0 %v646
      %674 = vmatprep.subr.mxu0 0.0
      %675 = vmatpush1.msra.mxu0 %v647
      %676 = vmatprep.subr.mxu0 0.0
      %677 = vmatpush1.msra.mxu0 %v648
      %678 = vmatprep.subr.mxu0 0.0
      %679 = vmatpush1.msra.mxu0 %v649
      %680 = vmatprep.subr.mxu0 0.0
      %681 = vmatpush1.msra.mxu0 %v650
      %682 = vmatprep.subr.mxu0 0.0
      %683 = vmatpush1.msra.mxu0 %v651
      %684 = vmatprep.subr.mxu0 0.0
      %685 = vmatpush1.msra.mxu0 0.0
      %686 = vmatprep.subr.mxu0 0.0
      %687 = vmatpush1.msra.mxu0 0.0
      %688 = vmatprep.subr.mxu0 0.0
      %689 = vmatpush1.msra.mxu0 0.0
      %690 = vmatprep.subr.mxu0 0.0
      %691 = vmatpush1.msra.mxu0 0.0
      %692 = vmatprep.subr.mxu0 0.0
      %693 = vmatpush1.msra.mxu0 0.0
      %694 = vmatprep.subr.mxu0 0.0
      %695 = vmatpush1.msra.mxu0 0.0
      %696 = vmatprep.subr.mxu0 0.0
      %697 = vmatpush1.msra.mxu0 0.0
      %698 = vmatprep.subr.mxu0 0.0
      %699 = vmatpush1.msra.mxu0 0.0
      %700 = vmatprep.subr.mxu0 0.0
      %701 = vmatpush1.msra.mxu0 0.0
      %702 = vmatprep.subr.mxu0 0.0
      %703 = vmatpush1.msra.mxu0 0.0
      %704 = vmatprep.subr.mxu0 0.0
      %705 = vmatpush1.msra.mxu0 0.0
      %706 = vmatprep.subr.mxu0 0.0
      %707 = vmatpush1.msra.mxu0 0.0
      %708 = vmatprep.subr.mxu0 0.0
      %709 = vmatpush1.msra.mxu0 0.0
      %710 = vmatprep.subr.mxu0 0.0
      %711 = vmatpush1.msra.mxu0 0.0
      %712 = vmatprep.subr.mxu0 0.0
      %713 = vmatpush1.msra.mxu0 0.0
      %714 = vmatprep.subr.mxu0 0.0
      %715 = vmatpush1.msra.mxu0 0.0
      %716 = vmatprep.mubr.f32.mxu0 0.0
      %717 = vmatmul.mubr.f32.gmra.mrb[0].mxu0 %v630
      %v718 = vpop.f32.mrb[0].mxu0
      %v719 = vadd.f32 0.0, %v718
      %v720 = vpop.f32.mrb[0].mxu0
      %721 = vmatprep.mubr.f32.mxu0 0.0
      %722 = vmatmul.mubr.f32.gmra.mrb[0].mxu0 %v631
      %v723 = vpop.f32.mrb[0].mxu0
      %v724 = vadd.f32 0.0, %v723
      %v725 = vpop.f32.mrb[0].mxu0
      %726 = vmatprep.mubr.f32.mxu0 0.0
      %727 = vmatmul.mubr.f32.gmra.mrb[0].mxu0 %v632
      %v728 = vpop.f32.mrb[0].mxu0
      %v729 = vadd.f32 0.0, %v728
      %v730 = vpop.f32.mrb[0].mxu0
      %731 = vmatprep.mubr.f32.mxu0 0.0
      %732 = vmatmul.mubr.f32.gmra.mrb[0].mxu0 %v633
      %v733 = vpop.f32.mrb[0].mxu0
      %v734 = vadd.f32 0.0, %v733
      %v735 = vpop.f32.mrb[0].mxu0
      %736 = vmatprep.mubr.f32.mxu0 0.0
      %737 = vmatmul.mubr.f32.gmra.mrb[0].mxu0 %v634
      %v738 = vpop.f32.mrb[0].mxu0
      %v739 = vadd.f32 0.0, %v738
      %v740 = vpop.f32.mrb[0].mxu0
      %741 = vdwg.mxu0
      %742 = vmatprep.subr.mxu0 0.0
      %743 = vmatpush1.msra.mxu0 %v614
      %744 = vmatprep.subr.mxu0 0.0
      %745 = vmatpush1.msra.mxu0 %v615
      %746 = vmatprep.subr.mxu0 0.0
      %747 = vmatpush1.msra.mxu0 %v616
      %748 = vmatprep.subr.mxu0 0.0
      %749 = vmatpush1.msra.mxu0 %v617
      %750 = vmatprep.subr.mxu0 0.0
      %751 = vmatpush1.msra.mxu0 %v618
      %752 = vmatprep.subr.mxu0 0.0
      %753 = vmatpush1.msra.mxu0 %v619
      %754 = vmatprep.subr.mxu0 0.0
      %755 = vmatpush1.msra.mxu0 %v620
      %756 = vmatprep.subr.mxu0 0.0
      %757 = vmatpush1.msra.mxu0 %v621
      %758 = vmatprep.subr.mxu0 0.0
      %759 = vmatpush1.msra.mxu0 %v622
      %760 = vmatprep.subr.mxu0 0.0
      %761 = vmatpush1.msra.mxu0 %v623
      %762 = vmatprep.subr.mxu0 0.0
      %763 = vmatpush1.msra.mxu0 %v624
      %764 = vmatprep.subr.mxu0 0.0
      %765 = vmatpush1.msra.mxu0 %v625
      %766 = vmatprep.subr.mxu0 0.0
      %767 = vmatpush1.msra.mxu0 %v626
      %768 = vmatprep.subr.mxu0 0.0
      %769 = vmatpush1.msra.mxu0 %v627
      %770 = vmatprep.subr.mxu0 0.0
      %771 = vmatpush1.msra.mxu0 %v628
      %772 = vmatprep.subr.mxu0 0.0
      %773 = vmatpush1.msra.mxu0 %v629
      %774 = vmatprep.subr.mxu0 0.0
      %775 = vmatpush1.msra.mxu0 0.0
      %776 = vmatprep.subr.mxu0 0.0
      %777 = vmatpush1.msra.mxu0 0.0
      %778 = vmatprep.subr.mxu0 0.0
      %779 = vmatpush1.msra.mxu0 0.0
      %780 = vmatprep.subr.mxu0 0.0
      %781 = vmatpush1.msra.mxu0 0.0
      %782 = vmatprep.subr.mxu0 0.0
      %783 = vmatpush1.msra.mxu0 0.0
      %784 = vmatprep.subr.mxu0 0.0
      %785 = vmatpush1.msra.mxu0 0.0
      %786 = vmatprep.subr.mxu0 0.0
      %787 = vmatpush1.msra.mxu0 0.0
      %788 = vmatprep.subr.mxu0 0.0
      %789 = vmatpush1.msra.mxu0 0.0
      %790 = vmatprep.subr.mxu0 0.0
      %791 = vmatpush1.msra.mxu0 0.0
      %792 = vmatprep.subr.mxu0 0.0
      %793 = vmatpush1.msra.mxu0 0.0
      %794 = vmatprep.subr.mxu0 0.0
      %795 = vmatpush1.msra.mxu0 0.0
      %796 = vmatprep.subr.mxu0 0.0
      %797 = vmatpush1.msra.mxu0 0.0
      %798 = vmatprep.subr.mxu0 0.0
      %799 = vmatpush1.msra.mxu0 0.0
      %800 = vmatprep.subr.mxu0 0.0
      %801 = vmatpush1.msra.mxu0 0.0
      %802 = vmatprep.subr.mxu0 0.0
      %803 = vmatpush1.msra.mxu0 0.0
      %804 = vmatprep.subr.mxu0 0.0
      %805 = vmatpush1.msra.mxu0 0.0
      %806 = vmatprep.mubr.f32.mxu0 0.0
      %807 = vmatmul.mubr.f32.gmra.mrb[0].mxu0 %v609
      %v808 = vpop.f32.mrb[0].mxu0
      %v809 = vadd.f32 %v719, %v808
      %v810 = vpop.f32.mrb[0].mxu0
      %811 = vmatprep.mubr.f32.mxu0 0.0
      %812 = vmatmul.mubr.f32.gmra.mrb[0].mxu0 %v610
      %v813 = vpop.f32.mrb[0].mxu0
      %v814 = vadd.f32 %v724, %v813
      %v815 = vpop.f32.mrb[0].mxu0
      %816 = vmatprep.mubr.f32.mxu0 0.0
      %817 = vmatmul.mubr.f32.gmra.mrb[0].mxu0 %v611
      %v818 = vpop.f32.mrb[0].mxu0
      %v819 = vadd.f32 %v729, %v818
      %v820 = vpop.f32.mrb[0].mxu0
      %821 = vmatprep.mubr.f32.mxu0 0.0
      %822 = vmatmul.mubr.f32.gmra.mrb[0].mxu0 %v612
      %v823 = vpop.f32.mrb[0].mxu0
      %v824 = vadd.f32 %v734, %v823
      %v825 = vpop.f32.mrb[0].mxu0
      %826 = vmatprep.mubr.f32.mxu0 0.0
      %827 = vmatmul.mubr.f32.gmra.mrb[0].mxu0 %v613
      %v828 = vpop.f32.mrb[0].mxu0
      %v829 = vadd.f32 %v739, %v828
      %v830 = vpop.f32.mrb[0].mxu0
      %831 = vdwg.mxu0
      %v832 = vld [vmem:[#allocation2 + $0x2] sm:$0xff]
      %v833 = vld [vmem:[#allocation2 + $0xa] sm:$0xff]
      %v834 = vld [vmem:[#allocation2 + $0x12] sm:$0xff]
      %v835 = vld [vmem:[#allocation2 + $0x1a] sm:$0xff]
      %v836 = vld [vmem:[#allocation2 + $0x22] sm:$0x3]
      %s837 = scalar_lea.vmem %s3, 256
      %v838 = vld [vmem:[%s837] sm:$0xff]
      %v839 = vld [vmem:[%s837 + $0x8] sm:$0xff]
      %v840 = vld [vmem:[%s837 + $0x10] sm:$0xff]
      %v841 = vld [vmem:[%s837 + $0x18] sm:$0xff]
      %v842 = vld [vmem:[%s837 + $0x20] sm:$0xff]
      %v843 = vld [vmem:[%s837 + $0x28] sm:$0xff]
      %v844 = vld [vmem:[%s837 + $0x30] sm:$0xff]
      %v845 = vld [vmem:[%s837 + $0x38] sm:$0xff]
      %v846 = vld [vmem:[%s837 + $0x40] sm:$0xff]
      %v847 = vld [vmem:[%s837 + $0x48] sm:$0xff]
      %v848 = vld [vmem:[%s837 + $0x50] sm:$0xff]
      %v849 = vld [vmem:[%s837 + $0x58] sm:$0xff]
      %v850 = vld [vmem:[%s837 + $0x60] sm:$0xff]
      %v851 = vld [vmem:[%s837 + $0x68] sm:$0xff]
      %v852 = vld [vmem:[%s837 + $0x70] sm:$0xff]
      %v853 = vld [vmem:[%s837 + $0x78] sm:$0xff]
      %854 = vmatprep.subr.mxu0 0.0
      %855 = vmatpush1.msra.mxu0 %v838
      %856 = vmatprep.subr.mxu0 0.0
      %857 = vmatpush1.msra.mxu0 %v839
      %858 = vmatprep.subr.mxu0 0.0
      %859 = vmatpush1.msra.mxu0 %v840
      %860 = vmatprep.subr.mxu0 0.0
      %861 = vmatpush1.msra.mxu0 %v841
      %862 = vmatprep.subr.mxu0 0.0
      %863 = vmatpush1.msra.mxu0 %v842
      %864 = vmatprep.subr.mxu0 0.0
      %865 = vmatpush1.msra.mxu0 %v843
      %866 = vmatprep.subr.mxu0 0.0
      %867 = vmatpush1.msra.mxu0 %v844
      %868 = vmatprep.subr.mxu0 0.0
      %869 = vmatpush1.msra.mxu0 %v845
      %870 = vmatprep.subr.mxu0 0.0
      %871 = vmatpush1.msra.mxu0 %v846
      %872 = vmatprep.subr.mxu0 0.0
      %873 = vmatpush1.msra.mxu0 %v847
      %874 = vmatprep.subr.mxu0 0.0
      %875 = vmatpush1.msra.mxu0 %v848
      %876 = vmatprep.subr.mxu0 0.0
      %877 = vmatpush1.msra.mxu0 %v849
      %878 = vmatprep.subr.mxu0 0.0
      %879 = vmatpush1.msra.mxu0 %v850
      %880 = vmatprep.subr.mxu0 0.0
      %881 = vmatpush1.msra.mxu0 %v851
      %882 = vmatprep.subr.mxu0 0.0
      %883 = vmatpush1.msra.mxu0 %v852
      %884 = vmatprep.subr.mxu0 0.0
      %885 = vmatpush1.msra.mxu0 %v853
      %886 = vmatprep.subr.mxu0 0.0
      %887 = vmatpush1.msra.mxu0 0.0
      %888 = vmatprep.subr.mxu0 0.0
      %889 = vmatpush1.msra.mxu0 0.0
      %890 = vmatprep.subr.mxu0 0.0
      %891 = vmatpush1.msra.mxu0 0.0
      %892 = vmatprep.subr.mxu0 0.0
      %893 = vmatpush1.msra.mxu0 0.0
      %894 = vmatprep.subr.mxu0 0.0
      %895 = vmatpush1.msra.mxu0 0.0
      %896 = vmatprep.subr.mxu0 0.0
      %897 = vmatpush1.msra.mxu0 0.0
      %898 = vmatprep.subr.mxu0 0.0
      %899 = vmatpush1.msra.mxu0 0.0
      %900 = vmatprep.subr.mxu0 0.0
      %901 = vmatpush1.msra.mxu0 0.0
      %902 = vmatprep.subr.mxu0 0.0
      %903 = vmatpush1.msra.mxu0 0.0
      %904 = vmatprep.subr.mxu0 0.0
      %905 = vmatpush1.msra.mxu0 0.0
      %906 = vmatprep.subr.mxu0 0.0
      %907 = vmatpush1.msra.mxu0 0.0
      %908 = vmatprep.subr.mxu0 0.0
      %909 = vmatpush1.msra.mxu0 0.0
      %910 = vmatprep.subr.mxu0 0.0
      %911 = vmatpush1.msra.mxu0 0.0
      %912 = vmatprep.subr.mxu0 0.0
      %913 = vmatpush1.msra.mxu0 0.0
      %914 = vmatprep.subr.mxu0 0.0
      %915 = vmatpush1.msra.mxu0 0.0
      %916 = vmatprep.subr.mxu0 0.0
      %917 = vmatpush1.msra.mxu0 0.0
      %918 = vmatprep.mubr.f32.mxu0 0.0
      %919 = vmatmul.mubr.f32.gmra.mrb[0].mxu0 %v832
      %v920 = vpop.f32.mrb[0].mxu0
      %v921 = vadd.f32 0.0, %v920
      %v922 = vpop.f32.mrb[0].mxu0
      %923 = vmatprep.mubr.f32.mxu0 0.0
      %924 = vmatmul.mubr.f32.gmra.mrb[0].mxu0 %v833
      %v925 = vpop.f32.mrb[0].mxu0
      %v926 = vadd.f32 0.0, %v925
      %v927 = vpop.f32.mrb[0].mxu0
      %928 = vmatprep.mubr.f32.mxu0 0.0
      %929 = vmatmul.mubr.f32.gmra.mrb[0].mxu0 %v834
      %v930 = vpop.f32.mrb[0].mxu0
      %v931 = vadd.f32 0.0, %v930
      %v932 = vpop.f32.mrb[0].mxu0
      %933 = vmatprep.mubr.f32.mxu0 0.0
      %934 = vmatmul.mubr.f32.gmra.mrb[0].mxu0 %v835
      %v935 = vpop.f32.mrb[0].mxu0
      %v936 = vadd.f32 0.0, %v935
      %v937 = vpop.f32.mrb[0].mxu0
      %938 = vmatprep.mubr.f32.mxu0 0.0
      %939 = vmatmul.mubr.f32.gmra.mrb[0].mxu0 %v836
      %v940 = vpop.f32.mrb[0].mxu0
      %v941 = vadd.f32 0.0, %v940
      %v942 = vpop.f32.mrb[0].mxu0
      %943 = vdwg.mxu0
      %v944 = vadd.f32 %v809, %v921
      %v945 = vadd.f32 %v814, %v926
      %v946 = vadd.f32 %v819, %v931
      %v947 = vadd.f32 %v824, %v936
      %v948 = vadd.f32 %v829, %v941
      %v950 = vlaneseq
      %v951 = vshrl.u32 %v950, 7
      %v952 = vsub.s32 0, %v951
      %v953 = vrot.slane %v238, %v952
      %v955 = vadd.f32 %v944, %v953
      %v956 = vadd.f32 %v945, %v953
      %v957 = vadd.f32 %v955, %v239
      %v958 = vadd.f32 %v956, %v240
      %v959 = vmax.f32 %v957, 0.0
      %v960 = vmax.f32 %v958, 0.0
      %961 = vst [vmem:[%s231] sm:$0xff] %v959
      %962 = vst [vmem:[%s231 + $0x8] sm:$0xff] %v960
      %v963 = vadd.f32 %v946, %v953
      %v964 = vadd.f32 %v947, %v953
      %v965 = vadd.f32 %v948, %v953
      %vm968 = vcmask 1041408
      %v969 = vrot.slane %v242, 6
      %v970 = vrot.slane %v243, 6
      %v971 = vsel %vm968, %v969, %v970
      %v975 = vadd.f32 %v963, %v969
      %v976 = vadd.f32 %v964, %v971
      %v977 = vadd.f32 %v965, %v970
      %v978 = vmax.f32 %v975, 0.0
      %v979 = vmax.f32 %v976, 0.0
      %v980 = vmax.f32 %v977, 0.0
      %s981 = scalar_lea.vmem %s231, 16
      %982 = vst [vmem:[%s981 - $0x2] sm:$0xfc] %v978
      %983 = vst [vmem:[%s981 + $0x6] sm:$0xff] %v979
      %984 = vst [vmem:[%s981 + $0xe] sm:$0x3] %v980
      %s985 = smul.u32 2, %s16
      %p986 = scmp.lt.s32.totalorder %s985, 3
      %s987 = scalar_select %p986, %s985, 3
      %s988 = smul.addr %s987, 2
      %s989 = smul.addr %s988, 8
      %s990 = scalar_lea.vmem %s5, %s989
      // Predicated region
      $region41: #{basic_block.1} parent=39 // pred_check
        %p991 = pneg %p144
      $region42: #{basic_block.1} parent=39 // pred_check_branch
        %993 = sbr.rel (%p991) target = $region44
      $region43: #{basic_block.1} parent=39 // pred_region
        %s994 = smul.u32 2, %s16
      $region44: #{basic_block.1} parent=39 // pred_fallthru
        _
    $region40: #{basic_block.1} parent=5 // pred_fallthru
      _
    %p995 = scmp.le.s32.totalorder 2, %s11
    // Predicated region
    $region45: #{basic_block.1} parent=5 // pred_check
      %p996 = pneg %p995
    $region46: #{basic_block.1} parent=5 // pred_check_branch
      %998 = sbr.rel (%p996) target = $region48
    $region47: #{basic_block.1} parent=5 // pred_region
      %s999 = ssub.s32 %s11, 2
      // Predicated region
      $region49: #{basic_block.1} parent=47 // pred_check
        %p1000 = pneg %p150
      $region50: #{basic_block.1} parent=47 // pred_check_branch
        %1002 = sbr.rel (%p1000) target = $region52
      $region51: #{basic_block.1} parent=47 // pred_region
        %s1003 = smul.u32 2, %s17
        %p1004 = scmp.lt.s32.totalorder %s1003, 3
        %s1005 = scalar_select %p1004, %s1003, 3
        %s1006 = smul.addr %s1005, 2
        %s1007 = smul.addr %s1006, 8
        %s1008 = scalar_lea.vmem %s5, %s1007
      $region52: #{basic_block.1} parent=47 // pred_fallthru
        _
    $region48: #{basic_block.1} parent=5 // pred_fallthru
      _
  $region6: #{basic_block.1} parent=0 // loop_footer
    %s15 = sadd.s32 1, %s11
  $region7: #{basic_block.1} parent=0 // loop_footer_branch
    %10 = sbr.rel target = $region3
  $region8: #{basic_block.1} parent=0 // loop_exit
    _

</llo_original>
